<compile_context>
chip_gen: v6e
topology: v6e:2x2x1
jax: 0.10.0
libtpu: 0.0.40
codegen_flags: <defaults>
</compile_context>

<pallas_src>
import math

import jax
import jax.numpy as jnp
from jax.experimental import pallas as pl
from jax.experimental.pallas import tpu as pltpu


_GELU_C = math.sqrt(2.0 / math.pi)


def _ffn_kernel(x_ref, w1_ref, b1_ref, w2_ref, b2_ref, o_ref, acc_ref):
    k = pl.program_id(1)

    @pl.when(k == 0)
    def _():
        acc_ref[...] = jnp.zeros_like(acc_ref)

    # First matmul: native-dtype operands on the MXU, f32 accumulation.
    h = jnp.dot(x_ref[...], w1_ref[...], preferred_element_type=jnp.float32)
    h = h + b1_ref[...].astype(jnp.float32)

    # GELU (tanh approximation, exactly as in the PyTorch module), in f32.
    g = 0.5 * h * (1.0 + jnp.tanh(_GELU_C * (h + 0.044715 * h * h * h)))

    # TODO(synk): nn.Dropout(0.1) is identity in eval mode; training-mode RNG
    # masking is not reproduced here.

    # Partial second matmul over this d_ff chunk; cast g back to the weight
    # dtype so bf16 weights keep the fast MXU path.
    acc_ref[...] += jnp.dot(
        g.astype(w2_ref.dtype), w2_ref[...], preferred_element_type=jnp.float32
    )

    @pl.when(k == pl.num_programs(1) - 1)
    def _():
        out = acc_ref[...] + b2_ref[...].astype(jnp.float32)
        o_ref[...] = out.astype(o_ref.dtype)


def _round_up(x, mult):
    return ((x + mult - 1) // mult) * mult


def _cdiv(a, b):
    return -(-a // b)


def _hw_params():
    """Best-effort TPU generation info (perf-only; correctness never depends on it)."""
    kind = ""
    try:
        kind = jax.devices()[0].device_kind.lower()
    except Exception:
        pass
    vmem = None
    try:
        vmem = int(pltpu.get_tpu_info().vmem_capacity_bytes)
    except Exception:
        vmem = None

    if "v7" in kind:
        cores, peak, bw, dflt_vmem, lane = 2, 996e12, 3.2e12, 64 << 20, 256
    elif "v6" in kind:
        cores, peak, bw, dflt_vmem, lane = 1, 918e12, 1.35e12, 128 << 20, 256
    elif "v5" in kind and ("lite" in kind or "v5e" in kind):
        cores, peak, bw, dflt_vmem, lane = 1, 197e12, 0.82e12, 128 << 20, 128
    elif "v5" in kind or "v4" in kind:  # v5p / v4 megacore
        cores, peak, bw, dflt_vmem, lane = 2, 459e12, 1.2e12, 128 << 20, 128
    else:
        cores, peak, bw, dflt_vmem, lane = 1, 900e12, 1.3e12, 128 << 20, 256
    if vmem is None:
        vmem = dflt_vmem
    return {"cores": cores, "peak_bf16": peak, "hbm_bw": bw,
            "vmem": vmem, "lane": lane}


def _step_vmem_bytes(rt, ft, d_model_a, x_bytes, w_bytes, out_bytes):
    """Per-grid-step VMEM working set (double-buffered pipeline bufs included)."""
    return (
        2 * rt * d_model_a * x_bytes        # x tile (double-buffered)
        + 2 * d_model_a * ft * w_bytes      # w1 chunk
        + 2 * ft * d_model_a * w_bytes      # w2 chunk
        + 2 * ft * 4 + 2 * d_model_a * 4    # bias chunks (f32)
        + 2 * rt * d_model_a * out_bytes    # out tile
        + rt * d_model_a * 4                # f32 accumulator scratch
        + rt * ft * 4                       # h / g intermediate (f32)
        + rt * ft * w_bytes                 # g cast for the 2nd matmul
        + (2 << 20)                         # compiler-internal scratch headroom
    )


def _select_tiles(m, d_model_a, d_ff_p, x_bytes, w_bytes, out_bytes, hw):
    """VMEM-budget + roofline driven (row_tile, ff_tile) selection."""
    budget = int(min(110 << 20, 0.85 * hw["vmem"]))
    cores = hw["cores"]
    # MXU rate for this operand width (f32 operands ~half rate).
    peak = hw["peak_bf16"] * min(1.0, 2.0 / max(x_bytes, w_bytes))
    bw = hw["hbm_bw"]

    m8 = _round_up(max(m, 1), 8)
    row_cands = {rt for rt in (256, 384, 512, 768, 1024, 1536, 2048)
                 if rt <= max(256, 4 * m8)}
    if m8 <= 2048:
        row_cands.add(m8)                       # single-tile, minimal-padding option
    ff_cands = {ft for ft in (256, 512, 768, 1024) if d_ff_p % ft == 0}
    if d_ff_p <= 2048:
        ff_cands.add(d_ff_p)
    if not ff_cands:                            # safety; d_ff_p construction avoids this
        ff_cands.add(d_ff_p)

    best = None
    for rt in sorted(row_cands):
        g0 = _cdiv(m, rt)
        m_pad = g0 * rt
        par = min(cores, g0)
        for ft in sorted(ff_cands):
            if _step_vmem_bytes(rt, ft, d_model_a, x_bytes, w_bytes, out_bytes) > budget:
                continue
            g1 = d_ff_p // ft
            flops = 4.0 * m_pad * d_model_a * d_ff_p
            compute_s = flops / (peak * par)
            weight_stream = g0 * 2.0 * d_model_a * d_ff_p * w_bytes  # re-streamed per row tile
            io = m_pad * d_model_a * (x_bytes + out_bytes)
            hbm_s = (weight_stream + io) / (bw * par)
            cost = max(compute_s, hbm_s) + g0 * g1 * 0.4e-6          # per-step overhead
            key = (cost, -rt, -ft)
            if best is None or key < best[0]:
                best = (key, rt, ft)

    if best is None:
        # Nothing >=256 rows fits the budget (huge d_model): degrade gracefully.
        ft = min(ff_cands)
        rt = 8
        for cand in (128, 64, 32, 16, 8):
            if _step_vmem_bytes(cand, ft, d_model_a, x_bytes, w_bytes, out_bytes) <= budget:
                rt = cand
                break
        best = (None, rt, ft)

    _, row_tile, ff_tile = best
    return row_tile, ff_tile


def make_dense_layer(w1, b1, w2, b2, *, compute_dtype=None):
    """Builds a jitted FFN forward: x -> w2 @ GELU(w1 @ x + b1) + b2 (dropout=identity).

    Weight layout (math layout, i.e. transposed vs. nn.Linear.weight):
      w1: (d_model, d_ff), w2: (d_ff, d_model).
    Weights are padded (and optionally cast to `compute_dtype`, e.g. bf16) ONCE
    here; only the activations are padded per call.
    """
    hw = _hw_params()
    lane = hw["lane"]

    d_model, d_ff = w1.shape
    assert w2.shape == (d_ff, d_model)

    if compute_dtype is not None:
        w1 = w1.astype(compute_dtype)
        w2 = w2.astype(compute_dtype)
    # Biases feed an f32 accumulator; keep them f32 for exact adds.
    b1 = b1.astype(jnp.float32)
    b2 = b2.astype(jnp.float32)

    d_model_a = _round_up(d_model, lane)
    ff_align = lane if d_ff <= lane else 256    # 256-aligned ff tiles for v6e/v7x MXU
    d_ff_p = _round_up(d_ff, ff_align)

    # Pre-pad parameters once (zero padding is mathematically exact).
    w1_p = jnp.pad(w1, ((0, d_model_a - d_model), (0, d_ff_p - d_ff)))
    w2_p = jnp.pad(w2, ((0, d_ff_p - d_ff), (0, d_model_a - d_model)))
    b1_p = jnp.pad(b1, (0, d_ff_p - d_ff)).reshape(1, d_ff_p)
    b2_p = jnp.pad(b2, (0, d_model_a - d_model)).reshape(1, d_model_a)

    op_dtype = w1_p.dtype
    w_bytes = op_dtype.itemsize

    def _forward(x, w1_p, b1_p, w2_p, b2_p):
        batch, seq, dm = x.shape
        assert dm == d_model, "input last dim must equal d_model"
        out_dtype = x.dtype
        m = batch * seq
        x_bytes = jnp.dtype(op_dtype).itemsize
        out_bytes = jnp.dtype(out_dtype).itemsize

        row_tile, ff_tile = _select_tiles(
            m, d_model_a, d_ff_p, x_bytes, w_bytes, out_bytes, hw)
        m_p = _round_up(m, row_tile)            # pad rows UP to the chosen row tile
        grid = (m_p // row_tile, d_ff_p // ff_tile)

        x2d = x.reshape(m, d_model).astype(op_dtype)
        x2d = jnp.pad(x2d, ((0, m_p - m), (0, d_model_a - d_model)))

        need = _step_vmem_bytes(row_tile, ff_tile, d_model_a,
                                x_bytes, w_bytes, out_bytes)
        limit_cap = int(min(0.9 * hw["vmem"], 112 << 20))
        if need > limit_cap:
            raise ValueError(
                f"FFN per-step working set ({need / 2**20:.1f} MiB) exceeds the "
                f"VMEM budget ({limit_cap / 2**20:.1f} MiB) on this TPU.")
        vmem_limit = int(min(limit_cap, max(need + (4 << 20), 32 << 20)))

        weight_bytes = (w1_p.size * w1_p.dtype.itemsize
                        + w2_p.size * w2_p.dtype.itemsize
                        + b1_p.size * 4 + b2_p.size * 4)
        cost = pl.CostEstimate(
            flops=4 * m_p * d_model_a * d_ff_p,
            transcendentals=m_p * d_ff_p,
            bytes_accessed=int(grid[0] * weight_bytes                 # weights re-streamed
                               + m_p * d_model_a * (x_bytes + out_bytes)),
        )

        out2d = pl.pallas_call(
            _ffn_kernel,
            out_shape=jax.ShapeDtypeStruct((m_p, d_model_a), out_dtype),
            grid_spec=pltpu.PrefetchScalarGridSpec(
                num_scalar_prefetch=0,
                grid=grid,
                in_specs=[
                    pl.BlockSpec((row_tile, d_model_a), lambda i, k: (i, 0)),
                    pl.BlockSpec((d_model_a, ff_tile), lambda i, k: (0, k)),
                    pl.BlockSpec((1, ff_tile), lambda i, k: (0, k)),
                    pl.BlockSpec((ff_tile, d_model_a), lambda i, k: (k, 0)),
                    pl.BlockSpec((1, d_model_a), lambda i, k: (0, 0)),
                ],
                out_specs=pl.BlockSpec((row_tile, d_model_a), lambda i, k: (i, 0)),
                scratch_shapes=[pltpu.VMEM((row_tile, d_model_a), jnp.float32)],
            ),
            compiler_params=pltpu.CompilerParams(
                dimension_semantics=("parallel", "arbitrary"),
                vmem_limit_bytes=vmem_limit,
            ),
            cost_estimate=cost,
        )(x2d, w1_p, b1_p, w2_p, b2_p)

        return out2d[:m, :d_model].reshape(batch, seq, d_model)

    fwd = jax.jit(_forward)
    return lambda x: fwd(x, w1_p, b1_p, w2_p, b2_p)


def dense_layer_forward(x, w1, b1, w2, b2, *, compute_dtype=None):
    """One-shot convenience wrapper (re-pads weights every call; prefer
    make_dense_layer for repeated use)."""
    return make_dense_layer(w1, b1, w2, b2, compute_dtype=compute_dtype)(x)


def _reference(x, w1, b1, w2, b2):
    h = jnp.einsum("bsd,df->bsf", x, w1) + b1
    g = 0.5 * h * (1.0 + jnp.tanh(_GELU_C * (h + 0.044715 * jnp.power(h, 3))))
    return jnp.einsum("bsf,fd->bsd", g, w2) + b2


if __name__ == "__main__":
    batch, seq, d_model, d_ff = 2, 8, 32, 64

    key = jax.random.PRNGKey(0)
    kx, k1, kb1, k2, kb2 = jax.random.split(key, 5)

    x = jax.random.normal(kx, (batch, seq, d_model), dtype=jnp.float32)

    # Deterministic parameter init (uniform, like nn.Linear's default scale).
    bound1 = 1.0 / math.sqrt(d_model)
    bound2 = 1.0 / math.sqrt(d_ff)
    w1 = jax.random.uniform(k1, (d_model, d_ff), jnp.float32, -bound1, bound1)
    b1 = jax.random.uniform(kb1, (d_ff,), jnp.float32, -bound1, bound1)
    w2 = jax.random.uniform(k2, (d_ff, d_model), jnp.float32, -bound2, bound2)
    b2 = jax.random.uniform(kb2, (d_model,), jnp.float32, -bound2, bound2)

    ref = _reference(x, w1, b1, w2, b2)

    # Exact-dtype (f32) path.
    ffn_f32 = make_dense_layer(w1, b1, w2, b2)
    out = jax.block_until_ready(ffn_f32(x))
    assert out.shape == (batch, seq, d_model)
    assert jnp.allclose(out, ref, atol=1e-5, rtol=1e-5), "f32 mismatch vs reference"

    # bf16-operand / f32-accumulate fast path (per perf review).
    ffn_bf16 = make_dense_layer(w1, b1, w2, b2, compute_dtype=jnp.bfloat16)
    out_bf16 = jax.block_until_ready(ffn_bf16(x))
    assert out_bf16.shape == (batch, seq, d_model)
    assert out_bf16.dtype == x.dtype
    assert jnp.allclose(out_bf16, ref, atol=5e-2, rtol=5e-2), "bf16 mismatch vs reference"

    print("KERNEL_OK")
</pallas_src>

<mosaic_0001>
module attributes {stable_mosaic.version = 11 : i64} {
  func.func @_ffn_kernel(%arg0: i32, %arg1: i32, %arg2: memref<16x256xf32, #tpu.memory_space<vmem>>, %arg3: memref<256x256xf32, #tpu.memory_space<vmem>>, %arg4: memref<1x256xf32, #tpu.memory_space<vmem>>, %arg5: memref<256x256xf32, #tpu.memory_space<vmem>>, %arg6: memref<1x256xf32, #tpu.memory_space<vmem>>, %arg7: memref<16x256xf32, #tpu.memory_space<vmem>>, %arg8: memref<16x256xf32, #tpu.memory_space<vmem>>) attributes {dimension_semantics = [#tpu.dimension_semantics<parallel>, #tpu.dimension_semantics<arbitrary>], iteration_bounds = array<i64: 1, 1>, scalar_prefetch = 0 : i64, scratch_operands = 1 : i64, tpu.core_type = #tpu.core_type<tc>, window_params = [{transform_indices = @transform_0, window_bounds = array<i64: 16, 256>}, {transform_indices = @transform_1, window_bounds = array<i64: 256, 256>}, {transform_indices = @transform_2, window_bounds = array<i64: 1, 256>}, {transform_indices = @transform_3, window_bounds = array<i64: 256, 256>}, {pipeline_mode = #tpu.pipeline_mode<synchronous>, transform_indices = @transform_4, window_bounds = array<i64: 1, 256>}, {transform_indices = @transform_5, window_bounds = array<i64: 16, 256>}]} {
    %c0_i32 = arith.constant 0 : i32
    %0 = arith.cmpi eq, %arg1, %c0_i32 : i32
    %1 = arith.extui %0 : i1 to i32
    %c0_i32_0 = arith.constant 0 : i32
    %2 = arith.cmpi ne, %1, %c0_i32_0 : i32
    scf.if %2 {
      %cst_19 = arith.constant 0.000000e+00 : f32
      %30 = vector.broadcast %cst_19 : f32 to vector<16x256xf32>
      %c0_20 = arith.constant 0 : index
      %c0_21 = arith.constant 0 : index
      %31 = vector.load %arg8[%c0_20, %c0_21] : memref<16x256xf32, #tpu.memory_space<vmem>>, vector<16x256xf32>
      tpu.vector_store %arg8[%c0_20, %c0_21], %30 {strides = array<i32>} : memref<16x256xf32, #tpu.memory_space<vmem>>, vector<16x256xf32>,
    } else {
    }
    %c0 = arith.constant 0 : index
    %c0_1 = arith.constant 0 : index
    %3 = vector.load %arg2[%c0, %c0_1] : memref<16x256xf32, #tpu.memory_space<vmem>>, vector<16x256xf32>
    %c0_2 = arith.constant 0 : index
    %c0_3 = arith.constant 0 : index
    %4 = vector.load %arg3[%c0_2, %c0_3] : memref<256x256xf32, #tpu.memory_space<vmem>>, vector<256x256xf32>
    %cst = arith.constant dense<0.000000e+00> : vector<16x256xf32>
    %5 = tpu.matmul %3, %4, %cst {dimension_numbers = #tpu.dot_dimension_numbers<[1], [0], [0], [1], [0, 0, 1, 1], [], []>} : vector<16x256xf32>, vector<256x256xf32>, vector<16x256xf32> -> vector<16x256xf32>
    %c0_4 = arith.constant 0 : index
    %c0_5 = arith.constant 0 : index
    %6 = vector.load %arg4[%c0_4, %c0_5] : memref<1x256xf32, #tpu.memory_space<vmem>>, vector<1x256xf32>
    %7 = vector.broadcast %6 : vector<1x256xf32> to vector<16x256xf32>
    %8 = arith.addf %5, %7 : vector<16x256xf32>
    %cst_6 = arith.constant 5.000000e-01 : f32
    %9 = vector.broadcast %cst_6 : f32 to vector<16x256xf32>
    %10 = arith.mulf %9, %8 : vector<16x256xf32>
    %cst_7 = arith.constant 4.471500e-02 : f32
    %11 = vector.broadcast %cst_7 : f32 to vector<16x256xf32>
    %12 = arith.mulf %11, %8 : vector<16x256xf32>
    %13 = arith.mulf %12, %8 : vector<16x256xf32>
    %14 = arith.mulf %13, %8 : vector<16x256xf32>
    %15 = arith.addf %8, %14 : vector<16x256xf32>
    %cst_8 = arith.constant 0.797884583 : f32
    %16 = vector.broadcast %cst_8 : f32 to vector<16x256xf32>
    %17 = arith.mulf %16, %15 : vector<16x256xf32>
    %18 = math.tanh %17 : vector<16x256xf32>
    %cst_9 = arith.constant 1.000000e+00 : f32
    %19 = vector.broadcast %cst_9 : f32 to vector<16x256xf32>
    %20 = arith.addf %19, %18 : vector<16x256xf32>
    %21 = arith.mulf %10, %20 : vector<16x256xf32>
    %c0_10 = arith.constant 0 : index
    %c0_11 = arith.constant 0 : index
    %22 = vector.load %arg8[%c0_10, %c0_11] : memref<16x256xf32, #tpu.memory_space<vmem>>, vector<16x256xf32>
    %c0_12 = arith.constant 0 : index
    %c0_13 = arith.constant 0 : index
    %23 = vector.load %arg5[%c0_12, %c0_13] : memref<256x256xf32, #tpu.memory_space<vmem>>, vector<256x256xf32>
    %cst_14 = arith.constant dense<0.000000e+00> : vector<16x256xf32>
    %24 = tpu.matmul %21, %23, %cst_14 {dimension_numbers = #tpu.dot_dimension_numbers<[1], [0], [0], [1], [0, 0, 1, 1], [], []>} : vector<16x256xf32>, vector<256x256xf32>, vector<16x256xf32> -> vector<16x256xf32>
    %25 = arith.addf %22, %24 : vector<16x256xf32>
    %c0_15 = arith.constant 0 : index
    %c0_16 = arith.constant 0 : index
    %26 = vector.load %arg8[%c0_15, %c0_16] : memref<16x256xf32, #tpu.memory_space<vmem>>, vector<16x256xf32>
    tpu.vector_store %arg8[%c0_15, %c0_16], %25 {strides = array<i32>} : memref<16x256xf32, #tpu.memory_space<vmem>>, vector<16x256xf32>,
    %c0_i32_17 = arith.constant 0 : i32
    %27 = arith.cmpi eq, %arg1, %c0_i32_17 : i32
    %28 = arith.extui %27 : i1 to i32
    %c0_i32_18 = arith.constant 0 : i32
    %29 = arith.cmpi ne, %28, %c0_i32_18 : i32
    scf.if %29 {
      %c0_19 = arith.constant 0 : index
      %c0_20 = arith.constant 0 : index
      %30 = vector.load %arg8[%c0_19, %c0_20] : memref<16x256xf32, #tpu.memory_space<vmem>>, vector<16x256xf32>
      %c0_21 = arith.constant 0 : index
      %c0_22 = arith.constant 0 : index
      %31 = vector.load %arg6[%c0_21, %c0_22] : memref<1x256xf32, #tpu.memory_space<vmem>>, vector<1x256xf32>
      %32 = vector.broadcast %31 : vector<1x256xf32> to vector<16x256xf32>
      %33 = arith.addf %30, %32 : vector<16x256xf32>
      %c0_23 = arith.constant 0 : index
      %c0_24 = arith.constant 0 : index
      %34 = vector.load %arg7[%c0_23, %c0_24] : memref<16x256xf32, #tpu.memory_space<vmem>>, vector<16x256xf32>
      tpu.vector_store %arg7[%c0_23, %c0_24], %33 {strides = array<i32>} : memref<16x256xf32, #tpu.memory_space<vmem>>, vector<16x256xf32>,
    } else {
    }
    return
  }
  func.func @transform_0(%arg0: i32, %arg1: i32) -> (i32, i32) {
    %c0_i32 = arith.constant 0 : i32
    %c0_i32_0 = arith.constant 0 : i32
    return %arg0, %c0_i32 : i32, i32
  }
  func.func @transform_1(%arg0: i32, %arg1: i32) -> (i32, i32) {
    %c0_i32 = arith.constant 0 : i32
    %c0_i32_0 = arith.constant 0 : i32
    return %c0_i32, %arg1 : i32, i32
  }
  func.func @transform_2(%arg0: i32, %arg1: i32) -> (i32, i32) {
    %c0_i32 = arith.constant 0 : i32
    %c0_i32_0 = arith.constant 0 : i32
    return %c0_i32, %arg1 : i32, i32
  }
  func.func @transform_3(%arg0: i32, %arg1: i32) -> (i32, i32) {
    %c0_i32 = arith.constant 0 : i32
    %c0_i32_0 = arith.constant 0 : i32
    return %arg1, %c0_i32 : i32, i32
  }
  func.func @transform_4(%arg0: i32, %arg1: i32) -> (i32, i32) {
    %c0_i32 = arith.constant 0 : i32
    %c0_i32_0 = arith.constant 0 : i32
    %c0_i32_1 = arith.constant 0 : i32
    return %c0_i32, %c0_i32_0 : i32, i32
  }
  func.func @transform_5(%arg0: i32, %arg1: i32) -> (i32, i32) {
    %c0_i32 = arith.constant 0 : i32
    %c0_i32_0 = arith.constant 0 : i32
    return %arg0, %c0_i32 : i32, i32
  }
}

</mosaic_0001>

<llo_original>
// kernel: _forward.1
$region0: #{_forward.1}
  #allocation0 [shape = 'u32[]', space=smem, size = 0x4, offset = 0x4, fixed_abs, tag = 'smem constant byte address 0x4 - core index']
  #allocation1 [shape = 'u32[144,128]{1,0:T(1,128)}', space=vmem, size = 0x12000, scoped, tag = 'internal scratch']
  #allocation2 [shape = 'f32[16,256]{1,0:T(8,128)}', space=vmem, size = 0x4000, scoped, tag = 'scratch operand']
  %s0 = inlined_call_operand.vmem [shape: f32[16,256], index: 0, kind: input, shape index: {}]
  %s1 = inlined_call_operand.hbm [shape: f32[256,256], index: 1, kind: input, shape index: {}]
  %s2 = inlined_call_operand.vmem [shape: f32[1,256], index: 2, kind: input, shape index: {}]
  %s3 = inlined_call_operand.hbm [shape: f32[256,256], index: 3, kind: input, shape index: {}]
  %s4 = inlined_call_operand.vmem [shape: f32[1,256], index: 4, kind: input, shape index: {}]
  %s5 = inlined_call_operand.vmem [shape: f32[16,256], index: 5, kind: output, shape index: {}]
  %s6 = sld [smem:[#allocation0]]
  $region46: #{_forward.1} parent=0
    _
  %s8 = ssub.s32 1, %s6
  %s9 = scalar_select 0, %s8, %s6
  $region1: #{_forward.1} parent=0
    #allocation3 [shape = 'u8[262144]{0}', space=vmem, size = 0x40000, scoped, tag = 'input window, operand 1, single buffered']
    #allocation4 [shape = 's32[1]{0}', space=sflag, size = 0x4, scoped, tag = 'scoped memory for _forward.1']
    #allocation5 [shape = 'u8[262144]{0}', space=vmem, size = 0x40000, scoped, tag = 'input window, operand 3, single buffered']
    #allocation6 [shape = 's32[1]{0}', space=sflag, size = 0x4, scoped, tag = 'scoped memory for _forward.1']
    %10 = vsyncpa [#allocation4], 0
    %11 = vsyncpa [#allocation6], 0
    // Predicated region
    $region2: #{_forward.1} parent=1 // pred_check
      _
    $region3: #{_forward.1} parent=1 // pred_check_branch
      %13 = sbr.rel (0) target = $region5
    $region4: #{_forward.1} parent=1 // pred_region
      _
    $region5: #{_forward.1} parent=1 // pred_fallthru
      _
    // Predicated region
    $region6: #{_forward.1} parent=1 // pred_check
      _
    $region7: #{_forward.1} parent=1 // pred_check_branch
      %15 = sbr.rel (0) target = $region9
    $region8: #{_forward.1} parent=1 // pred_region
      %s17 = ssub.s32 8192, 8192
      %18 = vsyncadd [#allocation4], %s17
      %s19 = sshll.u32 [#allocation3], 4
      %s20 = int_to_ptr.vmem [resolvable:$true] %s19
      %25 = dma.hbm_to_vmem [thread:$0]  %s1, 8192, %s20, [#allocation4], 256, 256, 16
    $region9: #{_forward.1} parent=1 // pred_fallthru
      _
    // Predicated region
    $region10: #{_forward.1} parent=1 // pred_check
      _
    $region11: #{_forward.1} parent=1 // pred_check_branch
      %27 = sbr.rel (0) target = $region13
    $region12: #{_forward.1} parent=1 // pred_region
      _
    $region13: #{_forward.1} parent=1 // pred_fallthru
      _
    // Predicated region
    $region14: #{_forward.1} parent=1 // pred_check
      _
    $region15: #{_forward.1} parent=1 // pred_check_branch
      %29 = sbr.rel (0) target = $region17
    $region16: #{_forward.1} parent=1 // pred_region
      %s31 = ssub.s32 8192, 8192
      %32 = vsyncadd [#allocation6], %s31
      %s33 = sshll.u32 [#allocation5], 4
      %s34 = int_to_ptr.vmem [resolvable:$true] %s33
      %39 = dma.hbm_to_vmem [thread:$0]  %s3, 8192, %s34, [#allocation6], 256, 256, 16
    $region17: #{_forward.1} parent=1 // pred_fallthru
      _
    // Predicated region
    $region18: #{_forward.1} parent=1 // pred_check
      _
    $region19: #{_forward.1} parent=1 // pred_check_branch
      %41 = sbr.rel (0) target = $region21
    $region20: #{_forward.1} parent=1 // pred_region
      _
    $region21: #{_forward.1} parent=1 // pred_fallthru
      _
    // Predicated region
    $region22: #{_forward.1} parent=1 // pred_check
      _
    $region23: #{_forward.1} parent=1 // pred_check_branch
      %43 = sbr.rel (0) target = $region25
    $region24: #{_forward.1} parent=1 // pred_region
      %44 = dma.done [#allocation4], 8192
    $region25: #{_forward.1} parent=1 // pred_fallthru
      _
    // Predicated region
    $region26: #{_forward.1} parent=1 // pred_check
      _
    $region27: #{_forward.1} parent=1 // pred_check_branch
      %46 = sbr.rel (0) target = $region29
    $region28: #{_forward.1} parent=1 // pred_region
      %47 = dma.done [#allocation6], 8192
    $region29: #{_forward.1} parent=1 // pred_fallthru
      _
    %p48 = scmp.eq.s32.totalorder 0, 0
    // Predicated region
    $region30: #{_forward.1} parent=1 // pred_check
      %p49 = pneg %p48
    $region31: #{_forward.1} parent=1 // pred_check_branch
      %51 = sbr.rel (%p49) target = $region33
    $region32: #{_forward.1} parent=1 // pred_region
      %52 = vst [vmem:[#allocation2] sm:$0xff] 0.0
      %53 = vst [vmem:[#allocation2 + $0x8] sm:$0xff] 0.0
      %54 = vst [vmem:[#allocation2 + $0x10] sm:$0xff] 0.0
      %55 = vst [vmem:[#allocation2 + $0x18] sm:$0xff] 0.0
    $region33: #{_forward.1} parent=1 // pred_fallthru
      _
    %v56 = vld [vmem:[%s0] sm:$0xff]
    %v57 = vld [vmem:[%s0 + $0x8] sm:$0xff]
    %v58 = vld [vmem:[%s0 + $0x10] sm:$0xff]
    %v59 = vld [vmem:[%s0 + $0x18] sm:$0xff]
    %v60 = vld [vmem:[#allocation3] sm:$0xff]
    %v61 = vld [vmem:[#allocation3 + $0x8] sm:$0xff]
    %v62 = vld [vmem:[#allocation3 + $0x10] sm:$0xff]
    %v63 = vld [vmem:[#allocation3 + $0x18] sm:$0xff]
    %v64 = vld [vmem:[#allocation3 + $0x20] sm:$0xff]
    %v65 = vld [vmem:[#allocation3 + $0x28] sm:$0xff]
    %v66 = vld [vmem:[#allocation3 + $0x30] sm:$0xff]
    %v67 = vld [vmem:[#allocation3 + $0x38] sm:$0xff]
    %v68 = vld [vmem:[#allocation3 + $0x40] sm:$0xff]
    %v69 = vld [vmem:[#allocation3 + $0x48] sm:$0xff]
    %v70 = vld [vmem:[#allocation3 + $0x50] sm:$0xff]
    %v71 = vld [vmem:[#allocation3 + $0x58] sm:$0xff]
    %v72 = vld [vmem:[#allocation3 + $0x60] sm:$0xff]
    %v73 = vld [vmem:[#allocation3 + $0x68] sm:$0xff]
    %v74 = vld [vmem:[#allocation3 + $0x70] sm:$0xff]
    %v75 = vld [vmem:[#allocation3 + $0x78] sm:$0xff]
    %v76 = vld [vmem:[#allocation3 + $0x80] sm:$0xff]
    %v77 = vld [vmem:[#allocation3 + $0x88] sm:$0xff]
    %v78 = vld [vmem:[#allocation3 + $0x90] sm:$0xff]
    %v79 = vld [vmem:[#allocation3 + $0x98] sm:$0xff]
    %v80 = vld [vmem:[#allocation3 + $0xa0] sm:$0xff]
    %v81 = vld [vmem:[#allocation3 + $0xa8] sm:$0xff]
    %v82 = vld [vmem:[#allocation3 + $0xb0] sm:$0xff]
    %v83 = vld [vmem:[#allocation3 + $0xb8] sm:$0xff]
    %v84 = vld [vmem:[#allocation3 + $0xc0] sm:$0xff]
    %v85 = vld [vmem:[#allocation3 + $0xc8] sm:$0xff]
    %v86 = vld [vmem:[#allocation3 + $0xd0] sm:$0xff]
    %v87 = vld [vmem:[#allocation3 + $0xd8] sm:$0xff]
    %v88 = vld [vmem:[#allocation3 + $0xe0] sm:$0xff]
    %v89 = vld [vmem:[#allocation3 + $0xe8] sm:$0xff]
    %v90 = vld [vmem:[#allocation3 + $0xf0] sm:$0xff]
    %v91 = vld [vmem:[#allocation3 + $0xf8] sm:$0xff]
    %v92 = vld [vmem:[#allocation3 + $0x100] sm:$0xff]
    %v93 = vld [vmem:[#allocation3 + $0x108] sm:$0xff]
    %v94 = vld [vmem:[#allocation3 + $0x110] sm:$0xff]
    %v95 = vld [vmem:[#allocation3 + $0x118] sm:$0xff]
    %v96 = vld [vmem:[#allocation3 + $0x120] sm:$0xff]
    %v97 = vld [vmem:[#allocation3 + $0x128] sm:$0xff]
    %v98 = vld [vmem:[#allocation3 + $0x130] sm:$0xff]
    %v99 = vld [vmem:[#allocation3 + $0x138] sm:$0xff]
    %v100 = vld [vmem:[#allocation3 + $0x140] sm:$0xff]
    %v101 = vld [vmem:[#allocation3 + $0x148] sm:$0xff]
    %v102 = vld [vmem:[#allocation3 + $0x150] sm:$0xff]
    %v103 = vld [vmem:[#allocation3 + $0x158] sm:$0xff]
    %v104 = vld [vmem:[#allocation3 + $0x160] sm:$0xff]
    %v105 = vld [vmem:[#allocation3 + $0x168] sm:$0xff]
    %v106 = vld [vmem:[#allocation3 + $0x170] sm:$0xff]
    %v107 = vld [vmem:[#allocation3 + $0x178] sm:$0xff]
    %v108 = vld [vmem:[#allocation3 + $0x180] sm:$0xff]
    %v109 = vld [vmem:[#allocation3 + $0x188] sm:$0xff]
    %v110 = vld [vmem:[#allocation3 + $0x190] sm:$0xff]
    %v111 = vld [vmem:[#allocation3 + $0x198] sm:$0xff]
    %v112 = vld [vmem:[#allocation3 + $0x1a0] sm:$0xff]
    %v113 = vld [vmem:[#allocation3 + $0x1a8] sm:$0xff]
    %v114 = vld [vmem:[#allocation3 + $0x1b0] sm:$0xff]
    %v115 = vld [vmem:[#allocation3 + $0x1b8] sm:$0xff]
    %v116 = vld [vmem:[#allocation3 + $0x1c0] sm:$0xff]
    %v117 = vld [vmem:[#allocation3 + $0x1c8] sm:$0xff]
    %v118 = vld [vmem:[#allocation3 + $0x1d0] sm:$0xff]
    %v119 = vld [vmem:[#allocation3 + $0x1d8] sm:$0xff]
    %v120 = vld [vmem:[#allocation3 + $0x1e0] sm:$0xff]
    %v121 = vld [vmem:[#allocation3 + $0x1e8] sm:$0xff]
    %v122 = vld [vmem:[#allocation3 + $0x1f0] sm:$0xff]
    %v123 = vld [vmem:[#allocation3 + $0x1f8] sm:$0xff]
    %v124 = vld [vmem:[%s2] sm:$0x3]
    %v126 = vlaneseq
    %v127 = vshrl.u32 %v126, 7
    %v128 = vsub.s32 0, %v127
    %v129 = vrot.slane %v124, %v128
    %v130 = vlaneseq
    %v131 = vshrl.u32 %v130, 7
    %v132 = vsub.s32 1, %v131
    %v133 = vrot.slane %v124, %v132
    %136 = vmatprep.subr.mxu0 %v91
    %137 = vmatpush1.msra.mxu0 %v90
    %138 = vmatprep.subr.mxu0 %v89
    %139 = vmatpush1.msra.mxu0 %v88
    %140 = vmatprep.subr.mxu0 %v87
    %141 = vmatpush1.msra.mxu0 %v86
    %142 = vmatprep.subr.mxu0 %v85
    %143 = vmatpush1.msra.mxu0 %v84
    %144 = vmatprep.subr.mxu0 %v83
    %145 = vmatpush1.msra.mxu0 %v82
    %146 = vmatprep.subr.mxu0 %v81
    %147 = vmatpush1.msra.mxu0 %v80
    %148 = vmatprep.subr.mxu0 %v79
    %149 = vmatpush1.msra.mxu0 %v78
    %150 = vmatprep.subr.mxu0 %v77
    %151 = vmatpush1.msra.mxu0 %v76
    %152 = vmatprep.subr.mxu0 %v75
    %153 = vmatpush1.msra.mxu0 %v74
    %154 = vmatprep.subr.mxu0 %v73
    %155 = vmatpush1.msra.mxu0 %v72
    %156 = vmatprep.subr.mxu0 %v71
    %157 = vmatpush1.msra.mxu0 %v70
    %158 = vmatprep.subr.mxu0 %v69
    %159 = vmatpush1.msra.mxu0 %v68
    %160 = vmatprep.subr.mxu0 %v67
    %161 = vmatpush1.msra.mxu0 %v66
    %162 = vmatprep.subr.mxu0 %v65
    %163 = vmatpush1.msra.mxu0 %v64
    %164 = vmatprep.subr.mxu0 %v63
    %165 = vmatpush1.msra.mxu0 %v62
    %166 = vmatprep.subr.mxu0 %v61
    %167 = vmatpush1.msra.mxu0 %v60
    %168 = vmatprep.subr.mxu0 %v123
    %169 = vmatpush2.msra.mxu0 %v122
    %170 = vmatprep.subr.mxu0 %v121
    %171 = vmatpush2.msra.mxu0 %v120
    %172 = vmatprep.subr.mxu0 %v119
    %173 = vmatpush2.msra.mxu0 %v118
    %174 = vmatprep.subr.mxu0 %v117
    %175 = vmatpush2.msra.mxu0 %v116
    %176 = vmatprep.subr.mxu0 %v115
    %177 = vmatpush2.msra.mxu0 %v114
    %178 = vmatprep.subr.mxu0 %v113
    %179 = vmatpush2.msra.mxu0 %v112
    %180 = vmatprep.subr.mxu0 %v111
    %181 = vmatpush2.msra.mxu0 %v110
    %182 = vmatprep.subr.mxu0 %v109
    %183 = vmatpush2.msra.mxu0 %v108
    %184 = vmatprep.subr.mxu0 %v107
    %185 = vmatpush2.msra.mxu0 %v106
    %186 = vmatprep.subr.mxu0 %v105
    %187 = vmatpush2.msra.mxu0 %v104
    %188 = vmatprep.subr.mxu0 %v103
    %189 = vmatpush2.msra.mxu0 %v102
    %190 = vmatprep.subr.mxu0 %v101
    %191 = vmatpush2.msra.mxu0 %v100
    %192 = vmatprep.subr.mxu0 %v99
    %193 = vmatpush2.msra.mxu0 %v98
    %194 = vmatprep.subr.mxu0 %v97
    %195 = vmatpush2.msra.mxu0 %v96
    %196 = vmatprep.subr.mxu0 %v95
    %197 = vmatpush2.msra.mxu0 %v94
    %198 = vmatprep.subr.mxu0 %v93
    %199 = vmatpush2.msra.mxu0 %v92
    %200 = vmatprep.mubr.f32.mxu0 %v57
    %201 = vmatmul.mubr.f32.gmra.mxu0 %v56
    %v202 = vpop.f32.mrf.mxu0
    %v203 = vadd.f32 %v129, %v202
    %v204 = vpop.f32.mrf.mxu0
    %v205 = vadd.f32 %v133, %v204
    %206 = vmatprep.mubr.f32.mxu0 %v59
    %207 = vmatmul.mubr.f32.gmra.mxu0 %v58
    %v208 = vpop.f32.mrf.mxu0
    %v209 = vadd.f32 %v129, %v208
    %v210 = vpop.f32.mrf.mxu0
    %v211 = vadd.f32 %v133, %v210
    %212 = vdwg.mxu0
    %v213 = vmul.f32 %v203, 0.5
    %v214 = vmul.f32 %v205, 0.5
    %v215 = vmul.f32 %v209, 0.5
    %v216 = vmul.f32 %v211, 0.5
    %v217 = vmul.f32 %v203, 0.044715
    %v218 = vmul.f32 %v205, 0.044715
    %v219 = vmul.f32 %v209, 0.044715
    %v220 = vmul.f32 %v211, 0.044715
    %v221 = vmul.f32 %v217, %v203
    %v222 = vmul.f32 %v218, %v205
    %v223 = vmul.f32 %v219, %v209
    %v224 = vmul.f32 %v220, %v211
    %v225 = vmul.f32 %v221, %v203
    %v226 = vmul.f32 %v222, %v205
    %v227 = vmul.f32 %v223, %v209
    %v228 = vmul.f32 %v224, %v211
    %v229 = vadd.f32 %v203, %v225
    %v230 = vadd.f32 %v205, %v226
    %v231 = vadd.f32 %v209, %v227
    %v232 = vadd.f32 %v211, %v228
    %v233 = vmul.f32 %v229, 0.7978846
    %v234 = vmul.f32 %v230, 0.7978846
    %v235 = vmul.f32 %v231, 0.7978846
    %v236 = vmul.f32 %v232, 0.7978846
    %v237 = vtanh.pop %v233
    %v238 = vtanh.pop %v234
    %v239 = vtanh.pop %v235
    %v240 = vtanh.pop %v236
    %v241 = vadd.f32 %v237, 1.0
    %v242 = vadd.f32 %v238, 1.0
    %v243 = vadd.f32 %v239, 1.0
    %v244 = vadd.f32 %v240, 1.0
    %v245 = vmul.f32 %v213, %v241
    %v246 = vmul.f32 %v214, %v242
    %v247 = vmul.f32 %v215, %v243
    %v248 = vmul.f32 %v216, %v244
    %v249 = vld [vmem:[#allocation2] sm:$0xff]
    %v250 = vld [vmem:[#allocation2 + $0x8] sm:$0xff]
    %v251 = vld [vmem:[#allocation2 + $0x10] sm:$0xff]
    %v252 = vld [vmem:[#allocation2 + $0x18] sm:$0xff]
    %v253 = vld [vmem:[#allocation5] sm:$0xff]
    %v254 = vld [vmem:[#allocation5 + $0x8] sm:$0xff]
    %v255 = vld [vmem:[#allocation5 + $0x10] sm:$0xff]
    %v256 = vld [vmem:[#allocation5 + $0x18] sm:$0xff]
    %v257 = vld [vmem:[#allocation5 + $0x20] sm:$0xff]
    %v258 = vld [vmem:[#allocation5 + $0x28] sm:$0xff]
    %v259 = vld [vmem:[#allocation5 + $0x30] sm:$0xff]
    %v260 = vld [vmem:[#allocation5 + $0x38] sm:$0xff]
    %v261 = vld [vmem:[#allocation5 + $0x40] sm:$0xff]
    %v262 = vld [vmem:[#allocation5 + $0x48] sm:$0xff]
    %v263 = vld [vmem:[#allocation5 + $0x50] sm:$0xff]
    %v264 = vld [vmem:[#allocation5 + $0x58] sm:$0xff]
    %v265 = vld [vmem:[#allocation5 + $0x60] sm:$0xff]
    %v266 = vld [vmem:[#allocation5 + $0x68] sm:$0xff]
    %v267 = vld [vmem:[#allocation5 + $0x70] sm:$0xff]
    %v268 = vld [vmem:[#allocation5 + $0x78] sm:$0xff]
    %v269 = vld [vmem:[#allocation5 + $0x80] sm:$0xff]
    %v270 = vld [vmem:[#allocation5 + $0x88] sm:$0xff]
    %v271 = vld [vmem:[#allocation5 + $0x90] sm:$0xff]
    %v272 = vld [vmem:[#allocation5 + $0x98] sm:$0xff]
    %v273 = vld [vmem:[#allocation5 + $0xa0] sm:$0xff]
    %v274 = vld [vmem:[#allocation5 + $0xa8] sm:$0xff]
    %v275 = vld [vmem:[#allocation5 + $0xb0] sm:$0xff]
    %v276 = vld [vmem:[#allocation5 + $0xb8] sm:$0xff]
    %v277 = vld [vmem:[#allocation5 + $0xc0] sm:$0xff]
    %v278 = vld [vmem:[#allocation5 + $0xc8] sm:$0xff]
    %v279 = vld [vmem:[#allocation5 + $0xd0] sm:$0xff]
    %v280 = vld [vmem:[#allocation5 + $0xd8] sm:$0xff]
    %v281 = vld [vmem:[#allocation5 + $0xe0] sm:$0xff]
    %v282 = vld [vmem:[#allocation5 + $0xe8] sm:$0xff]
    %v283 = vld [vmem:[#allocation5 + $0xf0] sm:$0xff]
    %v284 = vld [vmem:[#allocation5 + $0xf8] sm:$0xff]
    %v285 = vld [vmem:[#allocation5 + $0x100] sm:$0xff]
    %v286 = vld [vmem:[#allocation5 + $0x108] sm:$0xff]
    %v287 = vld [vmem:[#allocation5 + $0x110] sm:$0xff]
    %v288 = vld [vmem:[#allocation5 + $0x118] sm:$0xff]
    %v289 = vld [vmem:[#allocation5 + $0x120] sm:$0xff]
    %v290 = vld [vmem:[#allocation5 + $0x128] sm:$0xff]
    %v291 = vld [vmem:[#allocation5 + $0x130] sm:$0xff]
    %v292 = vld [vmem:[#allocation5 + $0x138] sm:$0xff]
    %v293 = vld [vmem:[#allocation5 + $0x140] sm:$0xff]
    %v294 = vld [vmem:[#allocation5 + $0x148] sm:$0xff]
    %v295 = vld [vmem:[#allocation5 + $0x150] sm:$0xff]
    %v296 = vld [vmem:[#allocation5 + $0x158] sm:$0xff]
    %v297 = vld [vmem:[#allocation5 + $0x160] sm:$0xff]
    %v298 = vld [vmem:[#allocation5 + $0x168] sm:$0xff]
    %v299 = vld [vmem:[#allocation5 + $0x170] sm:$0xff]
    %v300 = vld [vmem:[#allocation5 + $0x178] sm:$0xff]
    %v301 = vld [vmem:[#allocation5 + $0x180] sm:$0xff]
    %v302 = vld [vmem:[#allocation5 + $0x188] sm:$0xff]
    %v303 = vld [vmem:[#allocation5 + $0x190] sm:$0xff]
    %v304 = vld [vmem:[#allocation5 + $0x198] sm:$0xff]
    %v305 = vld [vmem:[#allocation5 + $0x1a0] sm:$0xff]
    %v306 = vld [vmem:[#allocation5 + $0x1a8] sm:$0xff]
    %v307 = vld [vmem:[#allocation5 + $0x1b0] sm:$0xff]
    %v308 = vld [vmem:[#allocation5 + $0x1b8] sm:$0xff]
    %v309 = vld [vmem:[#allocation5 + $0x1c0] sm:$0xff]
    %v310 = vld [vmem:[#allocation5 + $0x1c8] sm:$0xff]
    %v311 = vld [vmem:[#allocation5 + $0x1d0] sm:$0xff]
    %v312 = vld [vmem:[#allocation5 + $0x1d8] sm:$0xff]
    %v313 = vld [vmem:[#allocation5 + $0x1e0] sm:$0xff]
    %v314 = vld [vmem:[#allocation5 + $0x1e8] sm:$0xff]
    %v315 = vld [vmem:[#allocation5 + $0x1f0] sm:$0xff]
    %v316 = vld [vmem:[#allocation5 + $0x1f8] sm:$0xff]
    %317 = vmatprep.subr.mxu0 %v284
    %318 = vmatpush1.msra.mxu0 %v283
    %319 = vmatprep.subr.mxu0 %v282
    %320 = vmatpush1.msra.mxu0 %v281
    %321 = vmatprep.subr.mxu0 %v280
    %322 = vmatpush1.msra.mxu0 %v279
    %323 = vmatprep.subr.mxu0 %v278
    %324 = vmatpush1.msra.mxu0 %v277
    %325 = vmatprep.subr.mxu0 %v276
    %326 = vmatpush1.msra.mxu0 %v275
    %327 = vmatprep.subr.mxu0 %v274
    %328 = vmatpush1.msra.mxu0 %v273
    %329 = vmatprep.subr.mxu0 %v272
    %330 = vmatpush1.msra.mxu0 %v271
    %331 = vmatprep.subr.mxu0 %v270
    %332 = vmatpush1.msra.mxu0 %v269
    %333 = vmatprep.subr.mxu0 %v268
    %334 = vmatpush1.msra.mxu0 %v267
    %335 = vmatprep.subr.mxu0 %v266
    %336 = vmatpush1.msra.mxu0 %v265
    %337 = vmatprep.subr.mxu0 %v264
    %338 = vmatpush1.msra.mxu0 %v263
    %339 = vmatprep.subr.mxu0 %v262
    %340 = vmatpush1.msra.mxu0 %v261
    %341 = vmatprep.subr.mxu0 %v260
    %342 = vmatpush1.msra.mxu0 %v259
    %343 = vmatprep.subr.mxu0 %v258
    %344 = vmatpush1.msra.mxu0 %v257
    %345 = vmatprep.subr.mxu0 %v256
    %346 = vmatpush1.msra.mxu0 %v255
    %347 = vmatprep.subr.mxu0 %v254
    %348 = vmatpush1.msra.mxu0 %v253
    %349 = vmatprep.subr.mxu0 %v316
    %350 = vmatpush2.msra.mxu0 %v315
    %351 = vmatprep.subr.mxu0 %v314
    %352 = vmatpush2.msra.mxu0 %v313
    %353 = vmatprep.subr.mxu0 %v312
    %354 = vmatpush2.msra.mxu0 %v311
    %355 = vmatprep.subr.mxu0 %v310
    %356 = vmatpush2.msra.mxu0 %v309
    %357 = vmatprep.subr.mxu0 %v308
    %358 = vmatpush2.msra.mxu0 %v307
    %359 = vmatprep.subr.mxu0 %v306
    %360 = vmatpush2.msra.mxu0 %v305
    %361 = vmatprep.subr.mxu0 %v304
    %362 = vmatpush2.msra.mxu0 %v303
    %363 = vmatprep.subr.mxu0 %v302
    %364 = vmatpush2.msra.mxu0 %v301
    %365 = vmatprep.subr.mxu0 %v300
    %366 = vmatpush2.msra.mxu0 %v299
    %367 = vmatprep.subr.mxu0 %v298
    %368 = vmatpush2.msra.mxu0 %v297
    %369 = vmatprep.subr.mxu0 %v296
    %370 = vmatpush2.msra.mxu0 %v295
    %371 = vmatprep.subr.mxu0 %v294
    %372 = vmatpush2.msra.mxu0 %v293
    %373 = vmatprep.subr.mxu0 %v292
    %374 = vmatpush2.msra.mxu0 %v291
    %375 = vmatprep.subr.mxu0 %v290
    %376 = vmatpush2.msra.mxu0 %v289
    %377 = vmatprep.subr.mxu0 %v288
    %378 = vmatpush2.msra.mxu0 %v287
    %379 = vmatprep.subr.mxu0 %v286
    %380 = vmatpush2.msra.mxu0 %v285
    %381 = vmatprep.mubr.f32.mxu0 %v246
    %382 = vmatmul.mubr.f32.gmra.mxu0 %v245
    %v383 = vpop.f32.mrf.mxu0
    %v384 = vadd.f32 0.0, %v383
    %v385 = vpop.f32.mrf.mxu0
    %v386 = vadd.f32 0.0, %v385
    %387 = vmatprep.mubr.f32.mxu0 %v248
    %388 = vmatmul.mubr.f32.gmra.mxu0 %v247
    %v389 = vpop.f32.mrf.mxu0
    %v390 = vadd.f32 0.0, %v389
    %v391 = vpop.f32.mrf.mxu0
    %v392 = vadd.f32 0.0, %v391
    %393 = vdwg.mxu0
    %v394 = vadd.f32 %v249, %v384
    %v395 = vadd.f32 %v250, %v386
    %v396 = vadd.f32 %v251, %v390
    %v397 = vadd.f32 %v252, %v392
    %398 = vst [vmem:[#allocation2] sm:$0xff] %v394
    %399 = vst [vmem:[#allocation2 + $0x8] sm:$0xff] %v395
    %400 = vst [vmem:[#allocation2 + $0x10] sm:$0xff] %v396
    %401 = vst [vmem:[#allocation2 + $0x18] sm:$0xff] %v397
    // Predicated region
    $region34: #{_forward.1} parent=1 // pred_check
      %p402 = pneg %p48
    $region35: #{_forward.1} parent=1 // pred_check_branch
      %404 = sbr.rel (%p402) target = $region37
    $region36: #{_forward.1} parent=1 // pred_region
      %v405 = vld [vmem:[#allocation2] sm:$0xff]
      %v406 = vld [vmem:[#allocation2 + $0x8] sm:$0xff]
      %v407 = vld [vmem:[#allocation2 + $0x10] sm:$0xff]
      %v408 = vld [vmem:[#allocation2 + $0x18] sm:$0xff]
      %v409 = vld [vmem:[%s4] sm:$0x3]
      %v411 = vlaneseq
      %v412 = vshrl.u32 %v411, 7
      %v413 = vsub.s32 0, %v412
      %v414 = vrot.slane %v409, %v413
      %v415 = vlaneseq
      %v416 = vshrl.u32 %v415, 7
      %v417 = vsub.s32 1, %v416
      %v418 = vrot.slane %v409, %v417
      %v421 = vadd.f32 %v405, %v414
      %v422 = vadd.f32 %v406, %v418
      %v423 = vadd.f32 %v407, %v414
      %v424 = vadd.f32 %v408, %v418
      %425 = vst [vmem:[%s5] sm:$0xff] %v421
      %426 = vst [vmem:[%s5 + $0x8] sm:$0xff] %v422
      %427 = vst [vmem:[%s5 + $0x10] sm:$0xff] %v423
      %428 = vst [vmem:[%s5 + $0x18] sm:$0xff] %v424
    $region37: #{_forward.1} parent=1 // pred_fallthru
      _
    // Predicated region
    $region38: #{_forward.1} parent=1 // pred_check
      _
    $region39: #{_forward.1} parent=1 // pred_check_branch
      %430 = sbr.rel (0) target = $region41
    $region40: #{_forward.1} parent=1 // pred_region
      _
    $region41: #{_forward.1} parent=1 // pred_fallthru
      _
    // Predicated region
    $region42: #{_forward.1} parent=1 // pred_check
      _
    $region43: #{_forward.1} parent=1 // pred_check_branch
      %432 = sbr.rel (0) target = $region45
    $region44: #{_forward.1} parent=1 // pred_region
      _
    $region45: #{_forward.1} parent=1 // pred_fallthru
      _
    %433 = vsyncpa [#allocation4], 1
    %434 = vsyncpa [#allocation6], 1

</llo_original>
